<compile_context>
chip_gen: v5e
topology: v5e:2x2
jax: 0.10.0
libtpu: 0.0.40
codegen_flags: <defaults>
</compile_context>

<pallas_src>
import functools

import jax
import jax.numpy as jnp
from jax.experimental import pallas as pl
from jax.experimental.pallas import tpu as pltpu


def _round_up(x, m):
    return (x + m - 1) // m * m


def _fused_mlp_kernel(*refs, num_layers, acts, act_fn, compute_dtype):
    """One batch tile of the whole MLP.

    refs = (x_ref, w_0, b_0, ..., w_{L-1}, b_{L-1}, o_ref)
      x_ref : (tm, Pin0)        bf16 input tile (features zero-padded to lanes)
      w_l   : (Pin_l, Pout_l)   bf16 weights, zero-padded, stored as (in, out)
      b_l   : (8, Pout_l)       f32 bias broadcast over 8 sublanes, zero-padded
      o_ref : (tm, Pout_{L-1})  output tile
    Intermediate activations are carried as f32 values (vregs / compiler-
    managed VMEM); nothing round-trips HBM between layers.
    """
    x_ref = refs[0]
    o_ref = refs[1 + 2 * num_layers]
    cur = x_ref[...]
    for l in range(num_layers):                    # static unrolled layer loop
        w_ref = refs[1 + 2 * l]
        b_ref = refs[2 + 2 * l]
        y = jnp.dot(cur.astype(compute_dtype), w_ref[...],   # bf16 x bf16 MXU
                    preferred_element_type=jnp.float32)       # f32 accumulate
        y = y + b_ref[0:1, :]                       # f32 bias add on the VPU
        if acts[l]:
            y = act_fn(y)
        cur = y
    o_ref[...] = cur.astype(o_ref.dtype)


def prepare_mlp_params(params, compute_dtype=jnp.bfloat16):
    """One-time padding / casting of the MLP parameters (NOT per forward).

    params : list of (w, b), w stored as (in, out) == W^T, b as (out,).
    Returns (padded_layers, out_dim) where padded_layers is a list of
    (w_pad bf16 (Pin, Pout), b_pad f32 (8, Pout)).  Padding is exact zeros, so
    padded lanes never leak into real outputs.
    """
    padded = []
    for (w, b) in params:
        di, do = w.shape
        pi, po = _round_up(di, 128), _round_up(do, 128)
        w_pad = jnp.zeros((pi, po), compute_dtype).at[:di, :do].set(
            w.astype(compute_dtype))
        b_pad = jnp.zeros((8, po), jnp.float32).at[:, :do].set(
            jnp.broadcast_to(b.astype(jnp.float32)[None, :], (8, do)))
        padded.append((w_pad, b_pad))
    out_dim = params[-1][0].shape[1]
    return padded, out_dim


def mlp_forward(padded_layers, x, *, out_dim, out_act, act_fn=None,
                compute_dtype=jnp.bfloat16):
    """Fused forward of MLP: Linear -> act -> ... -> Linear [-> act if out_act]."""
    if act_fn is None:
        act_fn = lambda v: jnp.maximum(v, 0.0)     # nn.ReLU

    num_layers = len(padded_layers)
    B, in_dim = x.shape
    out_dtype = x.dtype
    p_in = padded_layers[0][0].shape[0]
    p_out = padded_layers[-1][0].shape[1]
    p_max = max([p_in] + [w.shape[1] for (w, _) in padded_layers])

    # Which layers get an activation (matches the PyTorch module).
    acts = tuple((l < num_layers - 1) or out_act for l in range(num_layers))

    # ---------------- VMEM budgeting (generation aware) ----------------
    try:
        vmem_cap = int(pltpu.get_tpu_info().vmem_capacity_bytes)
    except Exception:                      # interpret mode / older runtimes
        vmem_cap = 64 * 1024 * 1024
    wb_bytes = sum(w.size * w.dtype.itemsize + b.size * b.dtype.itemsize
                   for (w, b) in padded_layers)

    def _resident(tm, wb_factor=2):
        io = 2 * tm * p_in * 2 + 2 * tm * p_out * jnp.dtype(out_dtype).itemsize
        act = 2 * tm * p_max * 4           # carried f32 activations + slack
        return wb_factor * wb_bytes + io + act

    # Batch tile: up to 256 rows (fills the 2x256 MXU, fewer grid steps),
    # multiple of 8 sublanes, shrunk if the VMEM budget requires it.
    tm = min(_round_up(B, 8), 256)
    while tm > 8 and _resident(tm) > 0.5 * vmem_cap:
        tm = max(8, tm // 2)
    b_pad = _round_up(B, tm)

    vmem_limit = int(min(0.875 * vmem_cap,
                         max(32 * 1024 * 1024, 2 * _resident(tm))))

    # Pad the input once per call (features -> lanes, batch -> sublanes).
    x_pad = jnp.zeros((b_pad, p_in), compute_dtype).at[:B, :in_dim].set(
        x.astype(compute_dtype))

    kernel = functools.partial(_fused_mlp_kernel, num_layers=num_layers,
                               acts=acts, act_fn=act_fn,
                               compute_dtype=compute_dtype)

    flops = 2 * b_pad * sum(w.shape[0] * w.shape[1] for (w, _) in padded_layers)
    bytes_accessed = int(x_pad.size * 2 + wb_bytes
                         + b_pad * p_out * jnp.dtype(out_dtype).itemsize)

    flat_params = []
    for (w, b) in padded_layers:
        flat_params += [w, b]

    def _call(single_buffer):
        in_specs = [pl.BlockSpec((tm, p_in), lambda i: (i, 0))]
        for (w, b) in padded_layers:
            if single_buffer:
                # Constant index_map across the batch grid => one buffer only.
                in_specs.append(pl.BlockSpec(w.shape, lambda i: (0, 0),
                                             pipeline_mode=pl.Buffered(1)))
                in_specs.append(pl.BlockSpec(b.shape, lambda i: (0, 0),
                                             pipeline_mode=pl.Buffered(1)))
            else:
                in_specs.append(pl.BlockSpec(w.shape, lambda i: (0, 0)))
                in_specs.append(pl.BlockSpec(b.shape, lambda i: (0, 0)))
        return pl.pallas_call(
            kernel,
            out_shape=jax.ShapeDtypeStruct((b_pad, p_out), out_dtype),
            grid=(b_pad // tm,),
            in_specs=in_specs,
            out_specs=pl.BlockSpec((tm, p_out), lambda i: (i, 0)),
            compiler_params=pltpu.CompilerParams(
                dimension_semantics=("parallel",),   # batch tiles shard on TCs
                vmem_limit_bytes=vmem_limit),
            cost_estimate=pl.CostEstimate(
                flops=flops, transcendentals=0,
                bytes_accessed=bytes_accessed),
        )(x_pad, *flat_params)

    try:
        out_pad = _call(single_buffer=True)
    except Exception:
        # Fallback for jax versions without pipeline_mode=pl.Buffered support.
        out_pad = _call(single_buffer=False)

    # Slice away batch / feature padding.
    return out_pad[:B, :out_dim]


def init_mlp_params(key, hiddens, input_size, dtype=jnp.float32):
    """Deterministic PyTorch-style init: U(-1/sqrt(fan_in), +1/sqrt(fan_in))."""
    params = []
    prev = input_size
    for h in hiddens:
        key, kw, kb = jax.random.split(key, 3)
        bound = 1.0 / jnp.sqrt(prev)
        # Weight stored as (in, out) == W^T so the kernel does x @ w directly.
        w = jax.random.uniform(kw, (prev, h), dtype, minval=-bound, maxval=bound)
        b = jax.random.uniform(kb, (h,), dtype, minval=-bound, maxval=bound)
        params.append((w, b))
        prev = h
    return params


def mlp_reference(params, x, *, out_act):
    n = len(params)
    for i, (w, b) in enumerate(params):
        x = x @ w + b
        if (i != n - 1) or out_act:
            x = jnp.maximum(x, 0.0)
    return x


if __name__ == "__main__":
    key = jax.random.PRNGKey(0)
    batch = 8
    input_size = 16
    hiddens = [32, 32, 8]     # MLP(hiddens, input_size, nn.ReLU(), out_act=False)
    out_act = False

    key, kx = jax.random.split(key)
    x = jax.random.normal(kx, (batch, input_size), jnp.float32)
    params = init_mlp_params(key, hiddens, input_size)

    # One-time parameter preparation (padding + bf16 cast) — not per forward.
    padded_layers, out_dim = prepare_mlp_params(params)

    y = mlp_forward(padded_layers, x, out_dim=out_dim, out_act=out_act)
    y = jax.block_until_ready(y)

    # Sanity check against pure-JAX f32 reference (bf16 MXU operands with f32
    # accumulation => slightly looser tolerance than pure f32).
    y_ref = mlp_reference(params, x, out_act=out_act)
    assert y.shape == (batch, hiddens[-1])
    assert jnp.allclose(y, y_ref.astype(y.dtype), atol=5e-2, rtol=5e-2), (
        float(jnp.max(jnp.abs(y - y_ref))))

    print("KERNEL_OK")
</pallas_src>

<mosaic_0001>
module attributes {stable_mosaic.version = 11 : i64} {
  func.func @_fused_mlp_kernel(%arg0: i32, %arg1: memref<8x128xbf16, #tpu.memory_space<vmem>>, %arg2: memref<128x128xbf16, #tpu.memory_space<vmem>>, %arg3: memref<8x128xf32, #tpu.memory_space<vmem>>, %arg4: memref<128x128xbf16, #tpu.memory_space<vmem>>, %arg5: memref<8x128xf32, #tpu.memory_space<vmem>>, %arg6: memref<128x128xbf16, #tpu.memory_space<vmem>>, %arg7: memref<8x128xf32, #tpu.memory_space<vmem>>, %arg8: memref<8x128xf32, #tpu.memory_space<vmem>>) attributes {dimension_semantics = [#tpu.dimension_semantics<parallel>], iteration_bounds = array<i64: 1>, scalar_prefetch = 0 : i64, scratch_operands = 0 : i64, tpu.core_type = #tpu.core_type<tc>, window_params = [{transform_indices = @transform_0, window_bounds = array<i64: 8, 128>}, {pipeline_mode = #tpu.pipeline_mode<synchronous>, transform_indices = @transform_1, window_bounds = array<i64: 128, 128>}, {pipeline_mode = #tpu.pipeline_mode<synchronous>, transform_indices = @transform_2, window_bounds = array<i64: 8, 128>}, {pipeline_mode = #tpu.pipeline_mode<synchronous>, transform_indices = @transform_3, window_bounds = array<i64: 128, 128>}, {pipeline_mode = #tpu.pipeline_mode<synchronous>, transform_indices = @transform_4, window_bounds = array<i64: 8, 128>}, {pipeline_mode = #tpu.pipeline_mode<synchronous>, transform_indices = @transform_5, window_bounds = array<i64: 128, 128>}, {pipeline_mode = #tpu.pipeline_mode<synchronous>, transform_indices = @transform_6, window_bounds = array<i64: 8, 128>}, {transform_indices = @transform_7, window_bounds = array<i64: 8, 128>}]} {
    %c0 = arith.constant 0 : index
    %c0_0 = arith.constant 0 : index
    %0 = vector.load %arg1[%c0, %c0_0] : memref<8x128xbf16, #tpu.memory_space<vmem>>, vector<8x128xbf16>
    %c0_1 = arith.constant 0 : index
    %c0_2 = arith.constant 0 : index
    %1 = vector.load %arg2[%c0_1, %c0_2] : memref<128x128xbf16, #tpu.memory_space<vmem>>, vector<128x128xbf16>
    %cst = arith.constant dense<0.000000e+00> : vector<8x128xf32>
    %2 = tpu.matmul %0, %1, %cst {dimension_numbers = #tpu.dot_dimension_numbers<[1], [0], [0], [1], [0, 0, 1, 1], [], []>} : vector<8x128xbf16>, vector<128x128xbf16>, vector<8x128xf32> -> vector<8x128xf32>
    %c0_3 = arith.constant 0 : index
    %c0_4 = arith.constant 0 : index
    %3 = vector.load %arg3[%c0_3, %c0_4] : memref<8x128xf32, #tpu.memory_space<vmem>>, vector<1x128xf32>
    %4 = vector.broadcast %3 : vector<1x128xf32> to vector<8x128xf32>
    %5 = arith.addf %2, %4 : vector<8x128xf32>
    %cst_5 = arith.constant 0.000000e+00 : f32
    %6 = vector.broadcast %cst_5 : f32 to vector<8x128xf32>
    %7 = arith.maximumf %5, %6 : vector<8x128xf32>
    %8 = arith.truncf %7 : vector<8x128xf32> to vector<8x128xbf16>
    %c0_6 = arith.constant 0 : index
    %c0_7 = arith.constant 0 : index
    %9 = vector.load %arg4[%c0_6, %c0_7] : memref<128x128xbf16, #tpu.memory_space<vmem>>, vector<128x128xbf16>
    %cst_8 = arith.constant dense<0.000000e+00> : vector<8x128xf32>
    %10 = tpu.matmul %8, %9, %cst_8 {dimension_numbers = #tpu.dot_dimension_numbers<[1], [0], [0], [1], [0, 0, 1, 1], [], []>} : vector<8x128xbf16>, vector<128x128xbf16>, vector<8x128xf32> -> vector<8x128xf32>
    %c0_9 = arith.constant 0 : index
    %c0_10 = arith.constant 0 : index
    %11 = vector.load %arg5[%c0_9, %c0_10] : memref<8x128xf32, #tpu.memory_space<vmem>>, vector<1x128xf32>
    %12 = vector.broadcast %11 : vector<1x128xf32> to vector<8x128xf32>
    %13 = arith.addf %10, %12 : vector<8x128xf32>
    %cst_11 = arith.constant 0.000000e+00 : f32
    %14 = vector.broadcast %cst_11 : f32 to vector<8x128xf32>
    %15 = arith.maximumf %13, %14 : vector<8x128xf32>
    %16 = arith.truncf %15 : vector<8x128xf32> to vector<8x128xbf16>
    %c0_12 = arith.constant 0 : index
    %c0_13 = arith.constant 0 : index
    %17 = vector.load %arg6[%c0_12, %c0_13] : memref<128x128xbf16, #tpu.memory_space<vmem>>, vector<128x128xbf16>
    %cst_14 = arith.constant dense<0.000000e+00> : vector<8x128xf32>
    %18 = tpu.matmul %16, %17, %cst_14 {dimension_numbers = #tpu.dot_dimension_numbers<[1], [0], [0], [1], [0, 0, 1, 1], [], []>} : vector<8x128xbf16>, vector<128x128xbf16>, vector<8x128xf32> -> vector<8x128xf32>
    %c0_15 = arith.constant 0 : index
    %c0_16 = arith.constant 0 : index
    %19 = vector.load %arg7[%c0_15, %c0_16] : memref<8x128xf32, #tpu.memory_space<vmem>>, vector<1x128xf32>
    %20 = vector.broadcast %19 : vector<1x128xf32> to vector<8x128xf32>
    %21 = arith.addf %18, %20 : vector<8x128xf32>
    %c0_17 = arith.constant 0 : index
    %c0_18 = arith.constant 0 : index
    %22 = vector.load %arg8[%c0_17, %c0_18] : memref<8x128xf32, #tpu.memory_space<vmem>>, vector<8x128xf32>
    tpu.vector_store %arg8[%c0_17, %c0_18], %21 {strides = array<i32>} : memref<8x128xf32, #tpu.memory_space<vmem>>, vector<8x128xf32>,
    return
  }
  func.func @transform_0(%arg0: i32) -> (i32, i32) {
    %c0_i32 = arith.constant 0 : i32
    %c0_i32_0 = arith.constant 0 : i32
    return %arg0, %c0_i32 : i32, i32
  }
  func.func @transform_1(%arg0: i32) -> (i32, i32) {
    %c0_i32 = arith.constant 0 : i32
    %c0_i32_0 = arith.constant 0 : i32
    %c0_i32_1 = arith.constant 0 : i32
    return %c0_i32, %c0_i32_0 : i32, i32
  }
  func.func @transform_2(%arg0: i32) -> (i32, i32) {
    %c0_i32 = arith.constant 0 : i32
    %c0_i32_0 = arith.constant 0 : i32
    %c0_i32_1 = arith.constant 0 : i32
    return %c0_i32, %c0_i32_0 : i32, i32
  }
  func.func @transform_3(%arg0: i32) -> (i32, i32) {
    %c0_i32 = arith.constant 0 : i32
    %c0_i32_0 = arith.constant 0 : i32
    %c0_i32_1 = arith.constant 0 : i32
    return %c0_i32, %c0_i32_0 : i32, i32
  }
  func.func @transform_4(%arg0: i32) -> (i32, i32) {
    %c0_i32 = arith.constant 0 : i32
    %c0_i32_0 = arith.constant 0 : i32
    %c0_i32_1 = arith.constant 0 : i32
    return %c0_i32, %c0_i32_0 : i32, i32
  }
  func.func @transform_5(%arg0: i32) -> (i32, i32) {
    %c0_i32 = arith.constant 0 : i32
    %c0_i32_0 = arith.constant 0 : i32
    %c0_i32_1 = arith.constant 0 : i32
    return %c0_i32, %c0_i32_0 : i32, i32
  }
  func.func @transform_6(%arg0: i32) -> (i32, i32) {
    %c0_i32 = arith.constant 0 : i32
    %c0_i32_0 = arith.constant 0 : i32
    %c0_i32_1 = arith.constant 0 : i32
    return %c0_i32, %c0_i32_0 : i32, i32
  }
  func.func @transform_7(%arg0: i32) -> (i32, i32) {
    %c0_i32 = arith.constant 0 : i32
    %c0_i32_0 = arith.constant 0 : i32
    return %arg0, %c0_i32 : i32, i32
  }
}

module attributes {stable_mosaic.version = 11 : i64} {
  func.func @_fused_mlp_kernel(%arg0: i32, %arg1: memref<8x128xbf16, #tpu.memory_space<vmem>>, %arg2: memref<128x128xbf16, #tpu.memory_space<vmem>>, %arg3: memref<8x128xf32, #tpu.memory_space<vmem>>, %arg4: memref<128x128xbf16, #tpu.memory_space<vmem>>, %arg5: memref<8x128xf32, #tpu.memory_space<vmem>>, %arg6: memref<128x128xbf16, #tpu.memory_space<vmem>>, %arg7: memref<8x128xf32, #tpu.memory_space<vmem>>, %arg8: memref<8x128xf32, #tpu.memory_space<vmem>>) attributes {dimension_semantics = [#tpu.dimension_semantics<parallel>], iteration_bounds = array<i64: 1>, scalar_prefetch = 0 : i64, scratch_operands = 0 : i64, tpu.core_type = #tpu.core_type<tc>, window_params = [{transform_indices = @transform_0, window_bounds = array<i64: 8, 128>}, {pipeline_mode = #tpu.pipeline_mode<synchronous>, transform_indices = @transform_1, window_bounds = array<i64: 128, 128>}, {pipeline_mode = #tpu.pipeline_mode<synchronous>, transform_indices = @transform_2, window_bounds = array<i64: 8, 128>}, {pipeline_mode = #tpu.pipeline_mode<synchronous>, transform_indices = @transform_3, window_bounds = array<i64: 128, 128>}, {pipeline_mode = #tpu.pipeline_mode<synchronous>, transform_indices = @transform_4, window_bounds = array<i64: 8, 128>}, {pipeline_mode = #tpu.pipeline_mode<synchronous>, transform_indices = @transform_5, window_bounds = array<i64: 128, 128>}, {pipeline_mode = #tpu.pipeline_mode<synchronous>, transform_indices = @transform_6, window_bounds = array<i64: 8, 128>}, {transform_indices = @transform_7, window_bounds = array<i64: 8, 128>}]} {
    %c0 = arith.constant 0 : index
    %c0_0 = arith.constant 0 : index
    %0 = vector.load %arg1[%c0, %c0_0] : memref<8x128xbf16, #tpu.memory_space<vmem>>, vector<8x128xbf16>
    %c0_1 = arith.constant 0 : index
    %c0_2 = arith.constant 0 : index
    %1 = vector.load %arg2[%c0_1, %c0_2] : memref<128x128xbf16, #tpu.memory_space<vmem>>, vector<128x128xbf16>
    %cst = arith.constant dense<0.000000e+00> : vector<8x128xf32>
    %2 = tpu.matmul %0, %1, %cst {dimension_numbers = #tpu.dot_dimension_numbers<[1], [0], [0], [1], [0, 0, 1, 1], [], []>} : vector<8x128xbf16>, vector<128x128xbf16>, vector<8x128xf32> -> vector<8x128xf32>
    %c0_3 = arith.constant 0 : index
    %c0_4 = arith.constant 0 : index
    %3 = vector.load %arg3[%c0_3, %c0_4] : memref<8x128xf32, #tpu.memory_space<vmem>>, vector<1x128xf32>
    %4 = vector.broadcast %3 : vector<1x128xf32> to vector<8x128xf32>
    %5 = arith.addf %2, %4 : vector<8x128xf32>
    %cst_5 = arith.constant 0.000000e+00 : f32
    %6 = vector.broadcast %cst_5 : f32 to vector<8x128xf32>
    %7 = arith.maximumf %5, %6 : vector<8x128xf32>
    %8 = arith.truncf %7 : vector<8x128xf32> to vector<8x128xbf16>
    %c0_6 = arith.constant 0 : index
    %c0_7 = arith.constant 0 : index
    %9 = vector.load %arg4[%c0_6, %c0_7] : memref<128x128xbf16, #tpu.memory_space<vmem>>, vector<128x128xbf16>
    %cst_8 = arith.constant dense<0.000000e+00> : vector<8x128xf32>
    %10 = tpu.matmul %8, %9, %cst_8 {dimension_numbers = #tpu.dot_dimension_numbers<[1], [0], [0], [1], [0, 0, 1, 1], [], []>} : vector<8x128xbf16>, vector<128x128xbf16>, vector<8x128xf32> -> vector<8x128xf32>
    %c0_9 = arith.constant 0 : index
    %c0_10 = arith.constant 0 : index
    %11 = vector.load %arg5[%c0_9, %c0_10] : memref<8x128xf32, #tpu.memory_space<vmem>>, vector<1x128xf32>
    %12 = vector.broadcast %11 : vector<1x128xf32> to vector<8x128xf32>
    %13 = arith.addf %10, %12 : vector<8x128xf32>
    %cst_11 = arith.constant 0.000000e+00 : f32
    %14 = vector.broadcast %cst_11 : f32 to vector<8x128xf32>
    %15 = arith.maximumf %13, %14 : vector<8x128xf32>
    %16 = arith.truncf %15 : vector<8x128xf32> to vector<8x128xbf16>
    %c0_12 = arith.constant 0 : index
    %c0_13 = arith.constant 0 : index
    %17 = vector.load %arg6[%c0_12, %c0_13] : memref<128x128xbf16, #tpu.memory_space<vmem>>, vector<128x128xbf16>
    %cst_14 = arith.constant dense<0.000000e+00> : vector<8x128xf32>
    %18 = tpu.matmul %16, %17, %cst_14 {dimension_numbers = #tpu.dot_dimension_numbers<[1], [0], [0], [1], [0, 0, 1, 1], [], []>} : vector<8x128xbf16>, vector<128x128xbf16>, vector<8x128xf32> -> vector<8x128xf32>
    %c0_15 = arith.constant 0 : index
    %c0_16 = arith.constant 0 : index
    %19 = vector.load %arg7[%c0_15, %c0_16] : memref<8x128xf32, #tpu.memory_space<vmem>>, vector<1x128xf32>
    %20 = vector.broadcast %19 : vector<1x128xf32> to vector<8x128xf32>
    %21 = arith.addf %18, %20 : vector<8x128xf32>
    %c0_17 = arith.constant 0 : index
    %c0_18 = arith.constant 0 : index
    %22 = vector.load %arg8[%c0_17, %c0_18] : memref<8x128xf32, #tpu.memory_space<vmem>>, vector<8x128xf32>
    tpu.vector_store %arg8[%c0_17, %c0_18], %21 {strides = array<i32>} : memref<8x128xf32, #tpu.memory_space<vmem>>, vector<8x128xf32>,
    return
  }
  func.func @transform_0(%arg0: i32) -> (i32, i32) {
    %c0_i32 = arith.constant 0 : i32
    %c0_i32_0 = arith.constant 0 : i32
    return %arg0, %c0_i32 : i32, i32
  }
  func.func @transform_1(%arg0: i32) -> (i32, i32) {
    %c0_i32 = arith.constant 0 : i32
    %c0_i32_0 = arith.constant 0 : i32
    %c0_i32_1 = arith.constant 0 : i32
    return %c0_i32, %c0_i32_0 : i32, i32
  }
  func.func @transform_2(%arg0: i32) -> (i32, i32) {
    %c0_i32 = arith.constant 0 : i32
    %c0_i32_0 = arith.constant 0 : i32
    %c0_i32_1 = arith.constant 0 : i32
    return %c0_i32, %c0_i32_0 : i32, i32
  }
  func.func @transform_3(%arg0: i32) -> (i32, i32) {
    %c0_i32 = arith.constant 0 : i32
    %c0_i32_0 = arith.constant 0 : i32
    %c0_i32_1 = arith.constant 0 : i32
    return %c0_i32, %c0_i32_0 : i32, i32
  }
  func.func @transform_4(%arg0: i32) -> (i32, i32) {
    %c0_i32 = arith.constant 0 : i32
    %c0_i32_0 = arith.constant 0 : i32
    %c0_i32_1 = arith.constant 0 : i32
    return %c0_i32, %c0_i32_0 : i32, i32
  }
  func.func @transform_5(%arg0: i32) -> (i32, i32) {
    %c0_i32 = arith.constant 0 : i32
    %c0_i32_0 = arith.constant 0 : i32
    %c0_i32_1 = arith.constant 0 : i32
    return %c0_i32, %c0_i32_0 : i32, i32
  }
  func.func @transform_6(%arg0: i32) -> (i32, i32) {
    %c0_i32 = arith.constant 0 : i32
    %c0_i32_0 = arith.constant 0 : i32
    %c0_i32_1 = arith.constant 0 : i32
    return %c0_i32, %c0_i32_0 : i32, i32
  }
  func.func @transform_7(%arg0: i32) -> (i32, i32) {
    %c0_i32 = arith.constant 0 : i32
    %c0_i32_0 = arith.constant 0 : i32
    return %arg0, %c0_i32 : i32, i32
  }
}

</mosaic_0001>

<llo_original>
// kernel: tpu_custom_call.1
$region0: #{tpu_custom_call.1}
  #allocation0 [shape = 'u32[]', space=smem, size = 0x4, offset = 0x4, fixed_abs, tag = 'smem constant byte address 0x4 - core index']
  #allocation1 [shape = 'u32[72,128]{1,0:T(1,128)}', space=vmem, size = 0x9000, scoped, tag = 'internal scratch']
  %s0 = inlined_call_operand.hbm [shape: bf16[8,128], index: 0, kind: input, shape index: {}]
  %s1 = inlined_call_operand.hbm [shape: bf16[128,128], index: 1, kind: input, shape index: {}]
  %s2 = inlined_call_operand.hbm [shape: f32[8,128], index: 2, kind: input, shape index: {}]
  %s3 = inlined_call_operand.hbm [shape: bf16[128,128], index: 3, kind: input, shape index: {}]
  %s4 = inlined_call_operand.hbm [shape: f32[8,128], index: 4, kind: input, shape index: {}]
  %s5 = inlined_call_operand.hbm [shape: bf16[128,128], index: 5, kind: input, shape index: {}]
  %s6 = inlined_call_operand.hbm [shape: f32[8,128], index: 6, kind: input, shape index: {}]
  %s7 = inlined_call_operand.hbm [shape: f32[8,128], index: 7, kind: output, shape index: {}]
  %s8 = sld [smem:[#allocation0]]
  $region66: #{tpu_custom_call.1} parent=0
    _
  %s10 = ssub.s32 1, %s8
  %s11 = scalar_select 0, %s10, %s8
  $region1: #{tpu_custom_call.1} parent=0
    #allocation2 [shape = 'u8[2048]{0}', space=vmem, size = 0x800, scoped, tag = 'input window, operand 0, single buffered']
    #allocation3 [shape = 's32[1]{0}', space=sflag, size = 0x4, scoped, tag = 'scoped memory for tpu_custom_call.1']
    #allocation4 [shape = 's32[1]{0}', space=sflag, size = 0x4, scoped, tag = 'scoped memory for tpu_custom_call.1']
    #allocation5 [shape = 'u8[32768]{0}', space=vmem, size = 0x8000, scoped, tag = 'input window, operand 1, single buffered']
    #allocation6 [shape = 's32[1]{0}', space=sflag, size = 0x4, scoped, tag = 'scoped memory for tpu_custom_call.1']
    #allocation7 [shape = 'u8[4096]{0}', space=vmem, size = 0x1000, scoped, tag = 'input window, operand 2, single buffered']
    #allocation8 [shape = 'u8[32768]{0}', space=vmem, size = 0x8000, scoped, tag = 'input window, operand 3, single buffered']
    #allocation9 [shape = 's32[1]{0}', space=sflag, size = 0x4, scoped, tag = 'scoped memory for tpu_custom_call.1']
    #allocation10 [shape = 'u8[4096]{0}', space=vmem, size = 0x1000, scoped, tag = 'input window, operand 4, single buffered']
    #allocation11 [shape = 'u8[32768]{0}', space=vmem, size = 0x8000, scoped, tag = 'input window, operand 5, single buffered']
    #allocation12 [shape = 's32[1]{0}', space=sflag, size = 0x4, scoped, tag = 'scoped memory for tpu_custom_call.1']
    #allocation13 [shape = 'u8[4096]{0}', space=vmem, size = 0x1000, scoped, tag = 'input window, operand 6, single buffered']
    #allocation14 [shape = 'u8[4096]{0}', space=vmem, size = 0x1000, scoped, tag = 'output window, operand 0, single buffered']
    %12 = vsyncpa [#allocation3], 0
    %13 = vsyncpa [#allocation6], 0
    %14 = vsyncpa [#allocation9], 0
    %15 = vsyncpa [#allocation12], 0
    %16 = vsyncpa [#allocation4], 0
    // Predicated region
    $region2: #{tpu_custom_call.1} parent=1 // pred_check
      _
    $region3: #{tpu_custom_call.1} parent=1 // pred_check_branch
      %18 = sbr.rel (0) target = $region5
    $region4: #{tpu_custom_call.1} parent=1 // pred_region
      %20 = vsyncadd [#allocation3], 0
      %s22 = sshll.u32 %s0, 4
      %s23 = int_to_ptr.hbm [resolvable:$true] %s22
      %s24 = sshll.u32 [#allocation2], 4
      %s25 = int_to_ptr.vmem [resolvable:$true] %s24
      %27 = dma.hbm_to_vmem [thread:$0]  %s23, 64, %s25, [#allocation3]
    $region5: #{tpu_custom_call.1} parent=1 // pred_fallthru
      _
    // Predicated region
    $region6: #{tpu_custom_call.1} parent=1 // pred_check
      _
    $region7: #{tpu_custom_call.1} parent=1 // pred_check_branch
      %29 = sbr.rel (0) target = $region9
    $region8: #{tpu_custom_call.1} parent=1 // pred_region
      %31 = vsyncadd [#allocation6], 0
      %s32 = sshll.u32 %s1, 4
      %s33 = int_to_ptr.hbm [resolvable:$true] %s32
      %s34 = sshll.u32 [#allocation5], 4
      %s35 = int_to_ptr.vmem [resolvable:$true] %s34
      %40 = dma.hbm_to_vmem [thread:$0]  %s33, 1024, %s35, [#allocation6], 64, 64, 4
    $region9: #{tpu_custom_call.1} parent=1 // pred_fallthru
      _
    // Predicated region
    $region10: #{tpu_custom_call.1} parent=1 // pred_check
      _
    $region11: #{tpu_custom_call.1} parent=1 // pred_check_branch
      %42 = sbr.rel (0) target = $region13
    $region12: #{tpu_custom_call.1} parent=1 // pred_region
      %44 = vsyncadd [#allocation6], 0
      %s46 = sshll.u32 %s2, 4
      %s47 = int_to_ptr.hbm [resolvable:$true] %s46
      %s48 = sshll.u32 [#allocation7], 4
      %s49 = int_to_ptr.vmem [resolvable:$true] %s48
      %51 = dma.hbm_to_vmem [thread:$0]  %s47, 128, %s49, [#allocation6]
    $region13: #{tpu_custom_call.1} parent=1 // pred_fallthru
      _
    // Predicated region
    $region14: #{tpu_custom_call.1} parent=1 // pred_check
      _
    $region15: #{tpu_custom_call.1} parent=1 // pred_check_branch
      %53 = sbr.rel (0) target = $region17
    $region16: #{tpu_custom_call.1} parent=1 // pred_region
      %55 = vsyncadd [#allocation9], 0
      %s56 = sshll.u32 %s3, 4
      %s57 = int_to_ptr.hbm [resolvable:$true] %s56
      %s58 = sshll.u32 [#allocation8], 4
      %s59 = int_to_ptr.vmem [resolvable:$true] %s58
      %64 = dma.hbm_to_vmem [thread:$0]  %s57, 1024, %s59, [#allocation9], 64, 64, 4
    $region17: #{tpu_custom_call.1} parent=1 // pred_fallthru
      _
    // Predicated region
    $region18: #{tpu_custom_call.1} parent=1 // pred_check
      _
    $region19: #{tpu_custom_call.1} parent=1 // pred_check_branch
      %66 = sbr.rel (0) target = $region21
    $region20: #{tpu_custom_call.1} parent=1 // pred_region
      %68 = vsyncadd [#allocation9], 0
      %s70 = sshll.u32 %s4, 4
      %s71 = int_to_ptr.hbm [resolvable:$true] %s70
      %s72 = sshll.u32 [#allocation10], 4
      %s73 = int_to_ptr.vmem [resolvable:$true] %s72
      %75 = dma.hbm_to_vmem [thread:$0]  %s71, 128, %s73, [#allocation9]
    $region21: #{tpu_custom_call.1} parent=1 // pred_fallthru
      _
    // Predicated region
    $region22: #{tpu_custom_call.1} parent=1 // pred_check
      _
    $region23: #{tpu_custom_call.1} parent=1 // pred_check_branch
      %77 = sbr.rel (0) target = $region25
    $region24: #{tpu_custom_call.1} parent=1 // pred_region
      %79 = vsyncadd [#allocation12], 0
      %s80 = sshll.u32 %s5, 4
      %s81 = int_to_ptr.hbm [resolvable:$true] %s80
      %s82 = sshll.u32 [#allocation11], 4
      %s83 = int_to_ptr.vmem [resolvable:$true] %s82
      %88 = dma.hbm_to_vmem [thread:$0]  %s81, 1024, %s83, [#allocation12], 64, 64, 4
    $region25: #{tpu_custom_call.1} parent=1 // pred_fallthru
      _
    // Predicated region
    $region26: #{tpu_custom_call.1} parent=1 // pred_check
      _
    $region27: #{tpu_custom_call.1} parent=1 // pred_check_branch
      %90 = sbr.rel (0) target = $region29
    $region28: #{tpu_custom_call.1} parent=1 // pred_region
      %92 = vsyncadd [#allocation12], 0
      %s94 = sshll.u32 %s6, 4
      %s95 = int_to_ptr.hbm [resolvable:$true] %s94
      %s96 = sshll.u32 [#allocation13], 4
      %s97 = int_to_ptr.vmem [resolvable:$true] %s96
      %99 = dma.hbm_to_vmem [thread:$0]  %s95, 128, %s97, [#allocation12]
    $region29: #{tpu_custom_call.1} parent=1 // pred_fallthru
      _
    // Predicated region
    $region30: #{tpu_custom_call.1} parent=1 // pred_check
      _
    $region31: #{tpu_custom_call.1} parent=1 // pred_check_branch
      %101 = sbr.rel (0) target = $region33
    $region32: #{tpu_custom_call.1} parent=1 // pred_region
      %103 = dma.done [#allocation3], 64
    $region33: #{tpu_custom_call.1} parent=1 // pred_fallthru
      _
    // Predicated region
    $region34: #{tpu_custom_call.1} parent=1 // pred_check
      _
    $region35: #{tpu_custom_call.1} parent=1 // pred_check_branch
      %105 = sbr.rel (0) target = $region37
    $region36: #{tpu_custom_call.1} parent=1 // pred_region
      %107 = dma.done [#allocation6], 1024
    $region37: #{tpu_custom_call.1} parent=1 // pred_fallthru
      _
    // Predicated region
    $region38: #{tpu_custom_call.1} parent=1 // pred_check
      _
    $region39: #{tpu_custom_call.1} parent=1 // pred_check_branch
      %109 = sbr.rel (0) target = $region41
    $region40: #{tpu_custom_call.1} parent=1 // pred_region
      %111 = dma.done [#allocation6], 128
    $region41: #{tpu_custom_call.1} parent=1 // pred_fallthru
      _
    // Predicated region
    $region42: #{tpu_custom_call.1} parent=1 // pred_check
      _
    $region43: #{tpu_custom_call.1} parent=1 // pred_check_branch
      %113 = sbr.rel (0) target = $region45
    $region44: #{tpu_custom_call.1} parent=1 // pred_region
      %115 = dma.done [#allocation9], 1024
    $region45: #{tpu_custom_call.1} parent=1 // pred_fallthru
      _
    // Predicated region
    $region46: #{tpu_custom_call.1} parent=1 // pred_check
      _
    $region47: #{tpu_custom_call.1} parent=1 // pred_check_branch
      %117 = sbr.rel (0) target = $region49
    $region48: #{tpu_custom_call.1} parent=1 // pred_region
      %119 = dma.done [#allocation9], 128
    $region49: #{tpu_custom_call.1} parent=1 // pred_fallthru
      _
    // Predicated region
    $region50: #{tpu_custom_call.1} parent=1 // pred_check
      _
    $region51: #{tpu_custom_call.1} parent=1 // pred_check_branch
      %121 = sbr.rel (0) target = $region53
    $region52: #{tpu_custom_call.1} parent=1 // pred_region
      %123 = dma.done [#allocation12], 1024
    $region53: #{tpu_custom_call.1} parent=1 // pred_fallthru
      _
    // Predicated region
    $region54: #{tpu_custom_call.1} parent=1 // pred_check
      _
    $region55: #{tpu_custom_call.1} parent=1 // pred_check_branch
      %125 = sbr.rel (0) target = $region57
    $region56: #{tpu_custom_call.1} parent=1 // pred_region
      %127 = dma.done [#allocation12], 128
    $region57: #{tpu_custom_call.1} parent=1 // pred_fallthru
      _
    %v128 = vld [vmem:[#allocation2] sm:$0xf]
    %v129 = vld [vmem:[#allocation5] sm:$0xf]
    %v130 = vld [vmem:[#allocation5 + $0x4] sm:$0xf]
    %v131 = vld [vmem:[#allocation5 + $0x8] sm:$0xf]
    %v132 = vld [vmem:[#allocation5 + $0xc] sm:$0xf]
    %v133 = vld [vmem:[#allocation5 + $0x10] sm:$0xf]
    %v134 = vld [vmem:[#allocation5 + $0x14] sm:$0xf]
    %v135 = vld [vmem:[#allocation5 + $0x18] sm:$0xf]
    %v136 = vld [vmem:[#allocation5 + $0x1c] sm:$0xf]
    %v137 = vld [vmem:[#allocation5 + $0x20] sm:$0xf]
    %v138 = vld [vmem:[#allocation5 + $0x24] sm:$0xf]
    %v139 = vld [vmem:[#allocation5 + $0x28] sm:$0xf]
    %v140 = vld [vmem:[#allocation5 + $0x2c] sm:$0xf]
    %v141 = vld [vmem:[#allocation5 + $0x30] sm:$0xf]
    %v142 = vld [vmem:[#allocation5 + $0x34] sm:$0xf]
    %v143 = vld [vmem:[#allocation5 + $0x38] sm:$0xf]
    %v144 = vld [vmem:[#allocation5 + $0x3c] sm:$0xf]
    %v145 = vld [vmem:[#allocation7] sm:$0x1]
    %v146 = vperm.slane %v145, 0
    %v163 = vunpack.c.l.b16 %v129
    %v164 = vunpack.c.l.b16 %v130
    %v165 = vunpack.c.l.b16 %v131
    %v166 = vunpack.c.l.b16 %v132
    %v167 = vunpack.c.l.b16 %v133
    %v168 = vunpack.c.l.b16 %v134
    %v169 = vunpack.c.l.b16 %v135
    %v170 = vunpack.c.l.b16 %v136
    %v171 = vunpack.c.l.b16 %v137
    %v172 = vunpack.c.l.b16 %v138
    %v173 = vunpack.c.l.b16 %v139
    %v174 = vunpack.c.l.b16 %v140
    %v175 = vunpack.c.l.b16 %v141
    %v176 = vunpack.c.l.b16 %v142
    %v177 = vunpack.c.l.b16 %v143
    %v178 = vunpack.c.l.b16 %v144
    %v179 = vpack.c.b16 %v164, %v163
    %v180 = vpack.c.b16 %v166, %v165
    %v181 = vpack.c.b16 %v168, %v167
    %v182 = vpack.c.b16 %v170, %v169
    %v183 = vpack.c.b16 %v172, %v171
    %v184 = vpack.c.b16 %v174, %v173
    %v185 = vpack.c.b16 %v176, %v175
    %v186 = vpack.c.b16 %v178, %v177
    %195 = vmatpush.bf16.msra.mxu0 %v186
    %196 = vmatpush.bf16.msra.mxu0 %v185
    %197 = vmatpush.bf16.msra.mxu0 %v184
    %198 = vmatpush.bf16.msra.mxu0 %v183
    %199 = vmatpush.bf16.msra.mxu0 %v182
    %200 = vmatpush.bf16.msra.mxu0 %v181
    %201 = vmatpush.bf16.msra.mxu0 %v180
    %202 = vmatpush.bf16.msra.mxu0 %v179
    %203 = vmatmul.bf16.gmra.mxu0 %v128
    %v204 = vpop.f32.mrf.mxu0
    %v205 = vadd.f32 %v146, %v204
    %v206 = vpop.f32.mrf.mxu0
    %207 = vdwg.mxu0
    %v208 = vmax.f32 %v205, 0.0
    %v209 = vpack.c.bf16 %v208, %v208
    %v210 = vld [vmem:[#allocation8] sm:$0xf]
    %v211 = vld [vmem:[#allocation8 + $0x4] sm:$0xf]
    %v212 = vld [vmem:[#allocation8 + $0x8] sm:$0xf]
    %v213 = vld [vmem:[#allocation8 + $0xc] sm:$0xf]
    %v214 = vld [vmem:[#allocation8 + $0x10] sm:$0xf]
    %v215 = vld [vmem:[#allocation8 + $0x14] sm:$0xf]
    %v216 = vld [vmem:[#allocation8 + $0x18] sm:$0xf]
    %v217 = vld [vmem:[#allocation8 + $0x1c] sm:$0xf]
    %v218 = vld [vmem:[#allocation8 + $0x20] sm:$0xf]
    %v219 = vld [vmem:[#allocation8 + $0x24] sm:$0xf]
    %v220 = vld [vmem:[#allocation8 + $0x28] sm:$0xf]
    %v221 = vld [vmem:[#allocation8 + $0x2c] sm:$0xf]
    %v222 = vld [vmem:[#allocation8 + $0x30] sm:$0xf]
    %v223 = vld [vmem:[#allocation8 + $0x34] sm:$0xf]
    %v224 = vld [vmem:[#allocation8 + $0x38] sm:$0xf]
    %v225 = vld [vmem:[#allocation8 + $0x3c] sm:$0xf]
    %v226 = vld [vmem:[#allocation10] sm:$0x1]
    %v227 = vperm.slane %v226, 0
    %v244 = vunpack.c.l.b16 %v210
    %v245 = vunpack.c.l.b16 %v211
    %v246 = vunpack.c.l.b16 %v212
    %v247 = vunpack.c.l.b16 %v213
    %v248 = vunpack.c.l.b16 %v214
    %v249 = vunpack.c.l.b16 %v215
    %v250 = vunpack.c.l.b16 %v216
    %v251 = vunpack.c.l.b16 %v217
    %v252 = vunpack.c.l.b16 %v218
    %v253 = vunpack.c.l.b16 %v219
    %v254 = vunpack.c.l.b16 %v220
    %v255 = vunpack.c.l.b16 %v221
    %v256 = vunpack.c.l.b16 %v222
    %v257 = vunpack.c.l.b16 %v223
    %v258 = vunpack.c.l.b16 %v224
    %v259 = vunpack.c.l.b16 %v225
    %v260 = vpack.c.b16 %v245, %v244
    %v261 = vpack.c.b16 %v247, %v246
    %v262 = vpack.c.b16 %v249, %v248
    %v263 = vpack.c.b16 %v251, %v250
    %v264 = vpack.c.b16 %v253, %v252
    %v265 = vpack.c.b16 %v255, %v254
    %v266 = vpack.c.b16 %v257, %v256
    %v267 = vpack.c.b16 %v259, %v258
    %276 = vmatpush.bf16.msra.mxu0 %v267
    %277 = vmatpush.bf16.msra.mxu0 %v266
    %278 = vmatpush.bf16.msra.mxu0 %v265
    %279 = vmatpush.bf16.msra.mxu0 %v264
    %280 = vmatpush.bf16.msra.mxu0 %v263
    %281 = vmatpush.bf16.msra.mxu0 %v262
    %282 = vmatpush.bf16.msra.mxu0 %v261
    %283 = vmatpush.bf16.msra.mxu0 %v260
    %284 = vmatmul.bf16.gmra.mxu0 %v209
    %v285 = vpop.f32.mrf.mxu0
    %v286 = vadd.f32 %v227, %v285
    %v287 = vpop.f32.mrf.mxu0
    %288 = vdwg.mxu0
    %v289 = vmax.f32 %v286, 0.0
    %v290 = vpack.c.bf16 %v289, %v289
    %v291 = vld [vmem:[#allocation11] sm:$0xf]
    %v292 = vld [vmem:[#allocation11 + $0x4] sm:$0xf]
    %v293 = vld [vmem:[#allocation11 + $0x8] sm:$0xf]
    %v294 = vld [vmem:[#allocation11 + $0xc] sm:$0xf]
    %v295 = vld [vmem:[#allocation11 + $0x10] sm:$0xf]
    %v296 = vld [vmem:[#allocation11 + $0x14] sm:$0xf]
    %v297 = vld [vmem:[#allocation11 + $0x18] sm:$0xf]
    %v298 = vld [vmem:[#allocation11 + $0x1c] sm:$0xf]
    %v299 = vld [vmem:[#allocation11 + $0x20] sm:$0xf]
    %v300 = vld [vmem:[#allocation11 + $0x24] sm:$0xf]
    %v301 = vld [vmem:[#allocation11 + $0x28] sm:$0xf]
    %v302 = vld [vmem:[#allocation11 + $0x2c] sm:$0xf]
    %v303 = vld [vmem:[#allocation11 + $0x30] sm:$0xf]
    %v304 = vld [vmem:[#allocation11 + $0x34] sm:$0xf]
    %v305 = vld [vmem:[#allocation11 + $0x38] sm:$0xf]
    %v306 = vld [vmem:[#allocation11 + $0x3c] sm:$0xf]
    %v307 = vld [vmem:[#allocation13] sm:$0x1]
    %v308 = vperm.slane %v307, 0
    %v325 = vunpack.c.l.b16 %v291
    %v326 = vunpack.c.l.b16 %v292
    %v327 = vunpack.c.l.b16 %v293
    %v328 = vunpack.c.l.b16 %v294
    %v329 = vunpack.c.l.b16 %v295
    %v330 = vunpack.c.l.b16 %v296
    %v331 = vunpack.c.l.b16 %v297
    %v332 = vunpack.c.l.b16 %v298
    %v333 = vunpack.c.l.b16 %v299
    %v334 = vunpack.c.l.b16 %v300
    %v335 = vunpack.c.l.b16 %v301
    %v336 = vunpack.c.l.b16 %v302
    %v337 = vunpack.c.l.b16 %v303
    %v338 = vunpack.c.l.b16 %v304
    %v339 = vunpack.c.l.b16 %v305
    %v340 = vunpack.c.l.b16 %v306
    %v341 = vpack.c.b16 %v326, %v325
    %v342 = vpack.c.b16 %v328, %v327
    %v343 = vpack.c.b16 %v330, %v329
    %v344 = vpack.c.b16 %v332, %v331
    %v345 = vpack.c.b16 %v334, %v333
    %v346 = vpack.c.b16 %v336, %v335
    %v347 = vpack.c.b16 %v338, %v337
    %v348 = vpack.c.b16 %v340, %v339
    %357 = vmatpush.bf16.msra.mxu0 %v348
    %358 = vmatpush.bf16.msra.mxu0 %v347
    %359 = vmatpush.bf16.msra.mxu0 %v346
    %360 = vmatpush.bf16.msra.mxu0 %v345
    %361 = vmatpush.bf16.msra.mxu0 %v344
    %362 = vmatpush.bf16.msra.mxu0 %v343
    %363 = vmatpush.bf16.msra.mxu0 %v342
    %364 = vmatpush.bf16.msra.mxu0 %v341
    %365 = vmatmul.bf16.gmra.mxu0 %v290
    %v366 = vpop.f32.mrf.mxu0
    %v367 = vadd.f32 %v308, %v366
    %v368 = vpop.f32.mrf.mxu0
    %369 = vdwg.mxu0
    %370 = vst [vmem:[#allocation14] sm:$0xff] %v367
    // Predicated region
    $region58: #{tpu_custom_call.1} parent=1 // pred_check
      _
    $region59: #{tpu_custom_call.1} parent=1 // pred_check_branch
      %372 = sbr.rel (0) target = $region61
    $region60: #{tpu_custom_call.1} parent=1 // pred_region
      %374 = vsyncadd [#allocation4], 0
      %s376 = sshll.u32 [#allocation14], 4
      %s377 = int_to_ptr.vmem [resolvable:$true] %s376
      %s378 = sshll.u32 %s7, 4
      %s379 = int_to_ptr.hbm [resolvable:$true] %s378
      %381 = dma.vmem_to_hbm [thread:$0]  %s377, 128, %s379, [#allocation4]
    $region61: #{tpu_custom_call.1} parent=1 // pred_fallthru
      _
    // Predicated region
    $region62: #{tpu_custom_call.1} parent=1 // pred_check
      _
    $region63: #{tpu_custom_call.1} parent=1 // pred_check_branch
      %383 = sbr.rel (0) target = $region65
    $region64: #{tpu_custom_call.1} parent=1 // pred_region
      %385 = dma.done [#allocation4], 128
    $region65: #{tpu_custom_call.1} parent=1 // pred_fallthru
      _
    %386 = vsyncpa [#allocation3], 1
    %387 = vsyncpa [#allocation6], 1
    %388 = vsyncpa [#allocation9], 1
    %389 = vsyncpa [#allocation12], 1
    %390 = vsyncpa [#allocation4], 1

// kernel: tpu_custom_call.1
$region0: #{tpu_custom_call.1}
  #allocation0 [shape = 'u32[]', space=smem, size = 0x4, offset = 0x4, fixed_abs, tag = 'smem constant byte address 0x4 - core index']
  #allocation1 [shape = 'u32[72,128]{1,0:T(1,128)}', space=vmem, size = 0x9000, scoped, tag = 'internal scratch']
  %s0 = inlined_call_operand.hbm [shape: bf16[8,128], index: 0, kind: input, shape index: {}]
  %s1 = inlined_call_operand.hbm [shape: bf16[128,128], index: 1, kind: input, shape index: {}]
  %s2 = inlined_call_operand.hbm [shape: f32[8,128], index: 2, kind: input, shape index: {}]
  %s3 = inlined_call_operand.hbm [shape: bf16[128,128], index: 3, kind: input, shape index: {}]
  %s4 = inlined_call_operand.hbm [shape: f32[8,128], index: 4, kind: input, shape index: {}]
  %s5 = inlined_call_operand.hbm [shape: bf16[128,128], index: 5, kind: input, shape index: {}]
  %s6 = inlined_call_operand.hbm [shape: f32[8,128], index: 6, kind: input, shape index: {}]
  %s7 = inlined_call_operand.hbm [shape: f32[8,128], index: 7, kind: output, shape index: {}]
  %s8 = sld [smem:[#allocation0]]
  $region66: #{tpu_custom_call.1} parent=0
    _
  %s10 = ssub.s32 1, %s8
  %s11 = scalar_select 0, %s10, %s8
  $region1: #{tpu_custom_call.1} parent=0
    #allocation2 [shape = 'u8[2048]{0}', space=vmem, size = 0x800, scoped, tag = 'input window, operand 0, single buffered']
    #allocation3 [shape = 's32[1]{0}', space=sflag, size = 0x4, scoped, tag = 'scoped memory for tpu_custom_call.1']
    #allocation4 [shape = 's32[1]{0}', space=sflag, size = 0x4, scoped, tag = 'scoped memory for tpu_custom_call.1']
    #allocation5 [shape = 'u8[32768]{0}', space=vmem, size = 0x8000, scoped, tag = 'input window, operand 1, single buffered']
    #allocation6 [shape = 's32[1]{0}', space=sflag, size = 0x4, scoped, tag = 'scoped memory for tpu_custom_call.1']
    #allocation7 [shape = 'u8[4096]{0}', space=vmem, size = 0x1000, scoped, tag = 'input window, operand 2, single buffered']
    #allocation8 [shape = 'u8[32768]{0}', space=vmem, size = 0x8000, scoped, tag = 'input window, operand 3, single buffered']
    #allocation9 [shape = 's32[1]{0}', space=sflag, size = 0x4, scoped, tag = 'scoped memory for tpu_custom_call.1']
    #allocation10 [shape = 'u8[4096]{0}', space=vmem, size = 0x1000, scoped, tag = 'input window, operand 4, single buffered']
    #allocation11 [shape = 'u8[32768]{0}', space=vmem, size = 0x8000, scoped, tag = 'input window, operand 5, single buffered']
    #allocation12 [shape = 's32[1]{0}', space=sflag, size = 0x4, scoped, tag = 'scoped memory for tpu_custom_call.1']
    #allocation13 [shape = 'u8[4096]{0}', space=vmem, size = 0x1000, scoped, tag = 'input window, operand 6, single buffered']
    #allocation14 [shape = 'u8[4096]{0}', space=vmem, size = 0x1000, scoped, tag = 'output window, operand 0, single buffered']
    %12 = vsyncpa [#allocation3], 0
    %13 = vsyncpa [#allocation6], 0
    %14 = vsyncpa [#allocation9], 0
    %15 = vsyncpa [#allocation12], 0
    %16 = vsyncpa [#allocation4], 0
    // Predicated region
    $region2: #{tpu_custom_call.1} parent=1 // pred_check
      _
    $region3: #{tpu_custom_call.1} parent=1 // pred_check_branch
      %18 = sbr.rel (0) target = $region5
    $region4: #{tpu_custom_call.1} parent=1 // pred_region
      %20 = vsyncadd [#allocation3], 0
      %s22 = sshll.u32 %s0, 4
      %s23 = int_to_ptr.hbm [resolvable:$true] %s22
      %s24 = sshll.u32 [#allocation2], 4
      %s25 = int_to_ptr.vmem [resolvable:$true] %s24
      %27 = dma.hbm_to_vmem [thread:$0]  %s23, 64, %s25, [#allocation3]
    $region5: #{tpu_custom_call.1} parent=1 // pred_fallthru
      _
    // Predicated region
    $region6: #{tpu_custom_call.1} parent=1 // pred_check
      _
    $region7: #{tpu_custom_call.1} parent=1 // pred_check_branch
      %29 = sbr.rel (0) target = $region9
    $region8: #{tpu_custom_call.1} parent=1 // pred_region
      %31 = vsyncadd [#allocation6], 0
      %s32 = sshll.u32 %s1, 4
      %s33 = int_to_ptr.hbm [resolvable:$true] %s32
      %s34 = sshll.u32 [#allocation5], 4
      %s35 = int_to_ptr.vmem [resolvable:$true] %s34
      %40 = dma.hbm_to_vmem [thread:$0]  %s33, 1024, %s35, [#allocation6], 64, 64, 4
    $region9: #{tpu_custom_call.1} parent=1 // pred_fallthru
      _
    // Predicated region
    $region10: #{tpu_custom_call.1} parent=1 // pred_check
      _
    $region11: #{tpu_custom_call.1} parent=1 // pred_check_branch
      %42 = sbr.rel (0) target = $region13
    $region12: #{tpu_custom_call.1} parent=1 // pred_region
      %44 = vsyncadd [#allocation6], 0
      %s46 = sshll.u32 %s2, 4
      %s47 = int_to_ptr.hbm [resolvable:$true] %s46
      %s48 = sshll.u32 [#allocation7], 4
      %s49 = int_to_ptr.vmem [resolvable:$true] %s48
      %51 = dma.hbm_to_vmem [thread:$0]  %s47, 128, %s49, [#allocation6]
    $region13: #{tpu_custom_call.1} parent=1 // pred_fallthru
      _
    // Predicated region
    $region14: #{tpu_custom_call.1} parent=1 // pred_check
      _
    $region15: #{tpu_custom_call.1} parent=1 // pred_check_branch
      %53 = sbr.rel (0) target = $region17
    $region16: #{tpu_custom_call.1} parent=1 // pred_region
      %55 = vsyncadd [#allocation9], 0
      %s56 = sshll.u32 %s3, 4
      %s57 = int_to_ptr.hbm [resolvable:$true] %s56
      %s58 = sshll.u32 [#allocation8], 4
      %s59 = int_to_ptr.vmem [resolvable:$true] %s58
      %64 = dma.hbm_to_vmem [thread:$0]  %s57, 1024, %s59, [#allocation9], 64, 64, 4
    $region17: #{tpu_custom_call.1} parent=1 // pred_fallthru
      _
    // Predicated region
    $region18: #{tpu_custom_call.1} parent=1 // pred_check
      _
    $region19: #{tpu_custom_call.1} parent=1 // pred_check_branch
      %66 = sbr.rel (0) target = $region21
    $region20: #{tpu_custom_call.1} parent=1 // pred_region
      %68 = vsyncadd [#allocation9], 0
      %s70 = sshll.u32 %s4, 4
      %s71 = int_to_ptr.hbm [resolvable:$true] %s70
      %s72 = sshll.u32 [#allocation10], 4
      %s73 = int_to_ptr.vmem [resolvable:$true] %s72
      %75 = dma.hbm_to_vmem [thread:$0]  %s71, 128, %s73, [#allocation9]
    $region21: #{tpu_custom_call.1} parent=1 // pred_fallthru
      _
    // Predicated region
    $region22: #{tpu_custom_call.1} parent=1 // pred_check
      _
    $region23: #{tpu_custom_call.1} parent=1 // pred_check_branch
      %77 = sbr.rel (0) target = $region25
    $region24: #{tpu_custom_call.1} parent=1 // pred_region
      %79 = vsyncadd [#allocation12], 0
      %s80 = sshll.u32 %s5, 4
      %s81 = int_to_ptr.hbm [resolvable:$true] %s80
      %s82 = sshll.u32 [#allocation11], 4
      %s83 = int_to_ptr.vmem [resolvable:$true] %s82
      %88 = dma.hbm_to_vmem [thread:$0]  %s81, 1024, %s83, [#allocation12], 64, 64, 4
    $region25: #{tpu_custom_call.1} parent=1 // pred_fallthru
      _
    // Predicated region
    $region26: #{tpu_custom_call.1} parent=1 // pred_check
      _
    $region27: #{tpu_custom_call.1} parent=1 // pred_check_branch
      %90 = sbr.rel (0) target = $region29
    $region28: #{tpu_custom_call.1} parent=1 // pred_region
      %92 = vsyncadd [#allocation12], 0
      %s94 = sshll.u32 %s6, 4
      %s95 = int_to_ptr.hbm [resolvable:$true] %s94
      %s96 = sshll.u32 [#allocation13], 4
      %s97 = int_to_ptr.vmem [resolvable:$true] %s96
      %99 = dma.hbm_to_vmem [thread:$0]  %s95, 128, %s97, [#allocation12]
    $region29: #{tpu_custom_call.1} parent=1 // pred_fallthru
      _
    // Predicated region
    $region30: #{tpu_custom_call.1} parent=1 // pred_check
      _
    $region31: #{tpu_custom_call.1} parent=1 // pred_check_branch
      %101 = sbr.rel (0) target = $region33
    $region32: #{tpu_custom_call.1} parent=1 // pred_region
      %103 = dma.done [#allocation3], 64
    $region33: #{tpu_custom_call.1} parent=1 // pred_fallthru
      _
    // Predicated region
    $region34: #{tpu_custom_call.1} parent=1 // pred_check
      _
    $region35: #{tpu_custom_call.1} parent=1 // pred_check_branch
      %105 = sbr.rel (0) target = $region37
    $region36: #{tpu_custom_call.1} parent=1 // pred_region
      %107 = dma.done [#allocation6], 1024
    $region37: #{tpu_custom_call.1} parent=1 // pred_fallthru
      _
    // Predicated region
    $region38: #{tpu_custom_call.1} parent=1 // pred_check
      _
    $region39: #{tpu_custom_call.1} parent=1 // pred_check_branch
      %109 = sbr.rel (0) target = $region41
    $region40: #{tpu_custom_call.1} parent=1 // pred_region
      %111 = dma.done [#allocation6], 128
    $region41: #{tpu_custom_call.1} parent=1 // pred_fallthru
      _
    // Predicated region
    $region42: #{tpu_custom_call.1} parent=1 // pred_check
      _
    $region43: #{tpu_custom_call.1} parent=1 // pred_check_branch
      %113 = sbr.rel (0) target = $region45
    $region44: #{tpu_custom_call.1} parent=1 // pred_region
      %115 = dma.done [#allocation9], 1024
    $region45: #{tpu_custom_call.1} parent=1 // pred_fallthru
      _
    // Predicated region
    $region46: #{tpu_custom_call.1} parent=1 // pred_check
      _
    $region47: #{tpu_custom_call.1} parent=1 // pred_check_branch
      %117 = sbr.rel (0) target = $region49
    $region48: #{tpu_custom_call.1} parent=1 // pred_region
      %119 = dma.done [#allocation9], 128
    $region49: #{tpu_custom_call.1} parent=1 // pred_fallthru
      _
    // Predicated region
    $region50: #{tpu_custom_call.1} parent=1 // pred_check
      _
    $region51: #{tpu_custom_call.1} parent=1 // pred_check_branch
      %121 = sbr.rel (0) target = $region53
    $region52: #{tpu_custom_call.1} parent=1 // pred_region
      %123 = dma.done [#allocation12], 1024
    $region53: #{tpu_custom_call.1} parent=1 // pred_fallthru
      _
    // Predicated region
    $region54: #{tpu_custom_call.1} parent=1 // pred_check
      _
    $region55: #{tpu_custom_call.1} parent=1 // pred_check_branch
      %125 = sbr.rel (0) target = $region57
    $region56: #{tpu_custom_call.1} parent=1 // pred_region
      %127 = dma.done [#allocation12], 128
    $region57: #{tpu_custom_call.1} parent=1 // pred_fallthru
      _
    %v128 = vld [vmem:[#allocation2] sm:$0xf]
    %v129 = vld [vmem:[#allocation5] sm:$0xf]
    %v130 = vld [vmem:[#allocation5 + $0x4] sm:$0xf]
    %v131 = vld [vmem:[#allocation5 + $0x8] sm:$0xf]
    %v132 = vld [vmem:[#allocation5 + $0xc] sm:$0xf]
    %v133 = vld [vmem:[#allocation5 + $0x10] sm:$0xf]
    %v134 = vld [vmem:[#allocation5 + $0x14] sm:$0xf]
    %v135 = vld [vmem:[#allocation5 + $0x18] sm:$0xf]
    %v136 = vld [vmem:[#allocation5 + $0x1c] sm:$0xf]
    %v137 = vld [vmem:[#allocation5 + $0x20] sm:$0xf]
    %v138 = vld [vmem:[#allocation5 + $0x24] sm:$0xf]
    %v139 = vld [vmem:[#allocation5 + $0x28] sm:$0xf]
    %v140 = vld [vmem:[#allocation5 + $0x2c] sm:$0xf]
    %v141 = vld [vmem:[#allocation5 + $0x30] sm:$0xf]
    %v142 = vld [vmem:[#allocation5 + $0x34] sm:$0xf]
    %v143 = vld [vmem:[#allocation5 + $0x38] sm:$0xf]
    %v144 = vld [vmem:[#allocation5 + $0x3c] sm:$0xf]
    %v145 = vld [vmem:[#allocation7] sm:$0x1]
    %v146 = vperm.slane %v145, 0
    %v163 = vunpack.c.l.b16 %v129
    %v164 = vunpack.c.l.b16 %v130
    %v165 = vunpack.c.l.b16 %v131
    %v166 = vunpack.c.l.b16 %v132
    %v167 = vunpack.c.l.b16 %v133
    %v168 = vunpack.c.l.b16 %v134
    %v169 = vunpack.c.l.b16 %v135
    %v170 = vunpack.c.l.b16 %v136
    %v171 = vunpack.c.l.b16 %v137
    %v172 = vunpack.c.l.b16 %v138
    %v173 = vunpack.c.l.b16 %v139
    %v174 = vunpack.c.l.b16 %v140
    %v175 = vunpack.c.l.b16 %v141
    %v176 = vunpack.c.l.b16 %v142
    %v177 = vunpack.c.l.b16 %v143
    %v178 = vunpack.c.l.b16 %v144
    %v179 = vpack.c.b16 %v164, %v163
    %v180 = vpack.c.b16 %v166, %v165
    %v181 = vpack.c.b16 %v168, %v167
    %v182 = vpack.c.b16 %v170, %v169
    %v183 = vpack.c.b16 %v172, %v171
    %v184 = vpack.c.b16 %v174, %v173
    %v185 = vpack.c.b16 %v176, %v175
    %v186 = vpack.c.b16 %v178, %v177
    %195 = vmatpush.bf16.msra.mxu0 %v186
    %196 = vmatpush.bf16.msra.mxu0 %v185
    %197 = vmatpush.bf16.msra.mxu0 %v184
    %198 = vmatpush.bf16.msra.mxu0 %v183
    %199 = vmatpush.bf16.msra.mxu0 %v182
    %200 = vmatpush.bf16.msra.mxu0 %v181
    %201 = vmatpush.bf16.msra.mxu0 %v180
    %202 = vmatpush.bf16.msra.mxu0 %v179
    %203 = vmatmul.bf16.gmra.mxu0 %v128
    %v204 = vpop.f32.mrf.mxu0
    %v205 = vadd.f32 %v146, %v204
    %v206 = vpop.f32.mrf.mxu0
    %207 = vdwg.mxu0
    %v208 = vmax.f32 %v205, 0.0
    %v209 = vpack.c.bf16 %v208, %v208
    %v210 = vld [vmem:[#allocation8] sm:$0xf]
    %v211 = vld [vmem:[#allocation8 + $0x4] sm:$0xf]
    %v212 = vld [vmem:[#allocation8 + $0x8] sm:$0xf]
    %v213 = vld [vmem:[#allocation8 + $0xc] sm:$0xf]
    %v214 = vld [vmem:[#allocation8 + $0x10] sm:$0xf]
    %v215 = vld [vmem:[#allocation8 + $0x14] sm:$0xf]
    %v216 = vld [vmem:[#allocation8 + $0x18] sm:$0xf]
    %v217 = vld [vmem:[#allocation8 + $0x1c] sm:$0xf]
    %v218 = vld [vmem:[#allocation8 + $0x20] sm:$0xf]
    %v219 = vld [vmem:[#allocation8 + $0x24] sm:$0xf]
    %v220 = vld [vmem:[#allocation8 + $0x28] sm:$0xf]
    %v221 = vld [vmem:[#allocation8 + $0x2c] sm:$0xf]
    %v222 = vld [vmem:[#allocation8 + $0x30] sm:$0xf]
    %v223 = vld [vmem:[#allocation8 + $0x34] sm:$0xf]
    %v224 = vld [vmem:[#allocation8 + $0x38] sm:$0xf]
    %v225 = vld [vmem:[#allocation8 + $0x3c] sm:$0xf]
    %v226 = vld [vmem:[#allocation10] sm:$0x1]
    %v227 = vperm.slane %v226, 0
    %v244 = vunpack.c.l.b16 %v210
    %v245 = vunpack.c.l.b16 %v211
    %v246 = vunpack.c.l.b16 %v212
    %v247 = vunpack.c.l.b16 %v213
    %v248 = vunpack.c.l.b16 %v214
    %v249 = vunpack.c.l.b16 %v215
    %v250 = vunpack.c.l.b16 %v216
    %v251 = vunpack.c.l.b16 %v217
    %v252 = vunpack.c.l.b16 %v218
    %v253 = vunpack.c.l.b16 %v219
    %v254 = vunpack.c.l.b16 %v220
    %v255 = vunpack.c.l.b16 %v221
    %v256 = vunpack.c.l.b16 %v222
    %v257 = vunpack.c.l.b16 %v223
    %v258 = vunpack.c.l.b16 %v224
    %v259 = vunpack.c.l.b16 %v225
    %v260 = vpack.c.b16 %v245, %v244
    %v261 = vpack.c.b16 %v247, %v246
    %v262 = vpack.c.b16 %v249, %v248
    %v263 = vpack.c.b16 %v251, %v250
    %v264 = vpack.c.b16 %v253, %v252
    %v265 = vpack.c.b16 %v255, %v254
    %v266 = vpack.c.b16 %v257, %v256
    %v267 = vpack.c.b16 %v259, %v258
    %276 = vmatpush.bf16.msra.mxu0 %v267
    %277 = vmatpush.bf16.msra.mxu0 %v266
    %278 = vmatpush.bf16.msra.mxu0 %v265
    %279 = vmatpush.bf16.msra.mxu0 %v264
    %280 = vmatpush.bf16.msra.mxu0 %v263
    %281 = vmatpush.bf16.msra.mxu0 %v262
    %282 = vmatpush.bf16.msra.mxu0 %v261
    %283 = vmatpush.bf16.msra.mxu0 %v260
    %284 = vmatmul.bf16.gmra.mxu0 %v209
    %v285 = vpop.f32.mrf.mxu0
    %v286 = vadd.f32 %v227, %v285
    %v287 = vpop.f32.mrf.mxu0
    %288 = vdwg.mxu0
    %v289 = vmax.f32 %v286, 0.0
    %v290 = vpack.c.bf16 %v289, %v289
    %v291 = vld [vmem:[#allocation11] sm:$0xf]
    %v292 = vld [vmem:[#allocation11 + $0x4] sm:$0xf]
    %v293 = vld [vmem:[#allocation11 + $0x8] sm:$0xf]
    %v294 = vld [vmem:[#allocation11 + $0xc] sm:$0xf]
    %v295 = vld [vmem:[#allocation11 + $0x10] sm:$0xf]
    %v296 = vld [vmem:[#allocation11 + $0x14] sm:$0xf]
    %v297 = vld [vmem:[#allocation11 + $0x18] sm:$0xf]
    %v298 = vld [vmem:[#allocation11 + $0x1c] sm:$0xf]
    %v299 = vld [vmem:[#allocation11 + $0x20] sm:$0xf]
    %v300 = vld [vmem:[#allocation11 + $0x24] sm:$0xf]
    %v301 = vld [vmem:[#allocation11 + $0x28] sm:$0xf]
    %v302 = vld [vmem:[#allocation11 + $0x2c] sm:$0xf]
    %v303 = vld [vmem:[#allocation11 + $0x30] sm:$0xf]
    %v304 = vld [vmem:[#allocation11 + $0x34] sm:$0xf]
    %v305 = vld [vmem:[#allocation11 + $0x38] sm:$0xf]
    %v306 = vld [vmem:[#allocation11 + $0x3c] sm:$0xf]
    %v307 = vld [vmem:[#allocation13] sm:$0x1]
    %v308 = vperm.slane %v307, 0
    %v325 = vunpack.c.l.b16 %v291
    %v326 = vunpack.c.l.b16 %v292
    %v327 = vunpack.c.l.b16 %v293
    %v328 = vunpack.c.l.b16 %v294
    %v329 = vunpack.c.l.b16 %v295
    %v330 = vunpack.c.l.b16 %v296
    %v331 = vunpack.c.l.b16 %v297
    %v332 = vunpack.c.l.b16 %v298
    %v333 = vunpack.c.l.b16 %v299
    %v334 = vunpack.c.l.b16 %v300
    %v335 = vunpack.c.l.b16 %v301
    %v336 = vunpack.c.l.b16 %v302
    %v337 = vunpack.c.l.b16 %v303
    %v338 = vunpack.c.l.b16 %v304
    %v339 = vunpack.c.l.b16 %v305
    %v340 = vunpack.c.l.b16 %v306
    %v341 = vpack.c.b16 %v326, %v325
    %v342 = vpack.c.b16 %v328, %v327
    %v343 = vpack.c.b16 %v330, %v329
    %v344 = vpack.c.b16 %v332, %v331
    %v345 = vpack.c.b16 %v334, %v333
    %v346 = vpack.c.b16 %v336, %v335
    %v347 = vpack.c.b16 %v338, %v337
    %v348 = vpack.c.b16 %v340, %v339
    %357 = vmatpush.bf16.msra.mxu0 %v348
    %358 = vmatpush.bf16.msra.mxu0 %v347
    %359 = vmatpush.bf16.msra.mxu0 %v346
    %360 = vmatpush.bf16.msra.mxu0 %v345
    %361 = vmatpush.bf16.msra.mxu0 %v344
    %362 = vmatpush.bf16.msra.mxu0 %v343
    %363 = vmatpush.bf16.msra.mxu0 %v342
    %364 = vmatpush.bf16.msra.mxu0 %v341
    %365 = vmatmul.bf16.gmra.mxu0 %v290
    %v366 = vpop.f32.mrf.mxu0
    %v367 = vadd.f32 %v308, %v366
    %v368 = vpop.f32.mrf.mxu0
    %369 = vdwg.mxu0
    %370 = vst [vmem:[#allocation14] sm:$0xff] %v367
    // Predicated region
    $region58: #{tpu_custom_call.1} parent=1 // pred_check
      _
    $region59: #{tpu_custom_call.1} parent=1 // pred_check_branch
      %372 = sbr.rel (0) target = $region61
    $region60: #{tpu_custom_call.1} parent=1 // pred_region
      %374 = vsyncadd [#allocation4], 0
      %s376 = sshll.u32 [#allocation14], 4
      %s377 = int_to_ptr.vmem [resolvable:$true] %s376
      %s378 = sshll.u32 %s7, 4
      %s379 = int_to_ptr.hbm [resolvable:$true] %s378
      %381 = dma.vmem_to_hbm [thread:$0]  %s377, 128, %s379, [#allocation4]
    $region61: #{tpu_custom_call.1} parent=1 // pred_fallthru
      _
    // Predicated region
    $region62: #{tpu_custom_call.1} parent=1 // pred_check
      _
    $region63: #{tpu_custom_call.1} parent=1 // pred_check_branch
      %383 = sbr.rel (0) target = $region65
    $region64: #{tpu_custom_call.1} parent=1 // pred_region
      %385 = dma.done [#allocation4], 128
    $region65: #{tpu_custom_call.1} parent=1 // pred_fallthru
      _
    %386 = vsyncpa [#allocation3], 1
    %387 = vsyncpa [#allocation6], 1
    %388 = vsyncpa [#allocation9], 1
    %389 = vsyncpa [#allocation12], 1
    %390 = vsyncpa [#allocation4], 1

</llo_original>
